<compile_context>
chip_gen: v6e
topology: v6e:2x2x1
jax: 0.10.0
libtpu: 0.0.40
codegen_flags: <defaults>
</compile_context>

<pallas_src>
import functools

import jax
import jax.numpy as jnp
import numpy as np
from jax.experimental import pallas as pl
from jax.experimental.pallas import tpu as pltpu


def _round_up(x, m):
    return ((x + m - 1) // m) * m


def _round_down(x, m):
    return (x // m) * m


@functools.lru_cache(maxsize=1)
def _vmem_limit_bytes():
    """Generation-aware VMEM budget: ~75% of physical, capped at 96 MiB."""
    try:
        cap = int(pltpu.get_tpu_info().vmem_capacity_bytes)
    except Exception:
        cap = 64 * 1024 * 1024  # conservative fallback (safe on v7x too)
    return int(min(cap * 3 // 4, 96 * 1024 * 1024))


def _choose_tm(n, c_pad, itemsize, row_align):
    """Pick the row tile: ~2 MiB blocks, >=4 (even) steps on large problems."""
    tm = max(row_align, (2 * 1024 * 1024) // (c_pad * itemsize))  # ~2 MiB block
    if n >= 4 * 256:
        # Big enough that 4 steps still leaves >=256 rows each (v5e MXU):
        # keep >=4 grid steps so both v7x TensorCores reach steady state.
        tm = min(tm, _round_up(pl.cdiv(n, 4), row_align))
    tm = min(tm, _round_up(n, row_align))          # don't exceed the data
    tm = max(row_align, _round_down(tm, row_align))
    # Prefer an even step count so the megacore split is balanced (v7x).
    steps = pl.cdiv(n, tm)
    if steps > 1 and steps % 2 == 1:
        tm_alt = max(row_align, _round_up(pl.cdiv(n, steps + 1), row_align))
        if pl.cdiv(n, tm_alt) % 2 == 0:
            tm = tm_alt
    return tm


def _smt_kernel(s_ref, w1_ref, w2_ref, w3_ref, vec_ref, o_ref, *,
                inv_c, apply_mask):
    s_in = s_ref[...]                              # (tm, c_pad), io dtype
    s0 = s_in.astype(jnp.float32)                  # f32 residual copy
    x = s_in.astype(jnp.bfloat16)                  # bf16 MXU operand

    vec = vec_ref[...]                             # (8, c_pad) f32 packed vectors
    b1, b2, b3 = vec[0:1], vec[1:2], vec[2:3]
    gamma, beta, mask = vec[3:4], vec[4:5], vec[5:6]

    # 3-layer MLP on the MXU: bf16 operands, f32 accumulation.
    h = jnp.dot(x, w1_ref[...], preferred_element_type=jnp.float32) + b1
    h = jnp.maximum(h, 0.0)
    h = jnp.dot(h.astype(jnp.bfloat16), w2_ref[...],
                preferred_element_type=jnp.float32) + b2
    h = jnp.maximum(h, 0.0)
    h = jnp.dot(h.astype(jnp.bfloat16), w3_ref[...],
                preferred_element_type=jnp.float32) + b3

    s = h + s0                                     # residual (f32)

    # LayerNorm over the *true* channel count (inv_c = 1/c), two-pass variance.
    # Padded channels of `s` are exactly 0 (zero-padded input/weights/biases),
    # so the mean needs no mask; the centered values at padded channels are
    # (-mean), so they are masked out of the variance.
    mean = jnp.sum(s, axis=-1, keepdims=True) * inv_c
    centered = s - mean
    if apply_mask:
        centered = centered * mask
    var = jnp.sum(centered * centered, axis=-1, keepdims=True) * inv_c
    xhat = centered * jax.lax.rsqrt(var + 1e-5)    # eps matches nn.LayerNorm
    o_ref[...] = (xhat * gamma + beta).astype(o_ref.dtype)


def prepare_params(params):
    """Pad to the 128-lane width and cast weights to bf16 ONCE (reuse across calls)."""
    c = params["w1"].shape[0]
    c_pad = _round_up(max(c, 128), 128)
    dc = c_pad - c

    def pad_w(w):  # (c,c) -> (c_pad,c_pad) bf16
        w = jnp.asarray(w, jnp.float32)
        if dc:
            w = jnp.pad(w, ((0, dc), (0, dc)))
        return w.astype(jnp.bfloat16)

    def pad_v(v):  # (c,) -> (c_pad,) f32
        v = jnp.asarray(v, jnp.float32)
        if dc:
            v = jnp.pad(v, (0, dc))
        return v

    # Pack biases, LayerNorm affine params and the channel-validity mask into a
    # single (8, c_pad) block: one DMA / one double-buffer instead of five.
    vec = jnp.zeros((8, c_pad), jnp.float32)
    vec = vec.at[0].set(pad_v(params["b1"]))
    vec = vec.at[1].set(pad_v(params["b2"]))
    vec = vec.at[2].set(pad_v(params["b3"]))
    vec = vec.at[3].set(pad_v(params["ln_gamma"]))
    vec = vec.at[4].set(pad_v(params["ln_beta"]))
    vec = vec.at[5].set(pad_v(jnp.ones((c,), jnp.float32)))
    return {"w1p": pad_w(params["w1"]), "w2p": pad_w(params["w2"]),
            "w3p": pad_w(params["w3"]), "vec": vec}


@functools.partial(jax.jit, static_argnames=("tm", "io_dtype"))
def structure_module_transition(s, params, *, tm=None, io_dtype=jnp.bfloat16):
    """StructureModuleTransition forward.

    s: [..., c].  params: raw {"w*","b*","ln_*"} (in,out layout) or the output
    of prepare_params().  Returns [..., c] in io_dtype (bf16 by default).
    """
    if "w1p" not in params:
        params = prepare_params(params)

    orig_shape = s.shape
    c = orig_shape[-1]
    c_pad = params["w1p"].shape[0]
    dc = c_pad - c
    assert dc >= 0 and params["w1p"].shape == (c_pad, c_pad)

    s2d = s.reshape(-1, c).astype(io_dtype)
    n = s2d.shape[0]
    if dc:
        # Channel zero-padding is required for matmul / LayerNorm correctness.
        # Rows are NOT padded: the ragged last row block is handled by Pallas.
        s2d = jnp.pad(s2d, ((0, 0), (0, dc)))

    itemsize = np.dtype(io_dtype).itemsize
    row_align = 16 if itemsize == 2 else 8         # bf16 min tile is (16,128)
    tm_eff = tm if tm is not None else _choose_tm(n, c_pad, itemsize, row_align)
    tm_eff = max(row_align, _round_up(tm_eff, row_align))
    steps = pl.cdiv(n, tm_eff)

    row_spec = pl.BlockSpec((tm_eff, c_pad), lambda i: (i, 0))
    # Grid-invariant weight/vector blocks; at large c keep a single buffer so
    # they don't steal VMEM from the row stream (matters on v7x's 64 MiB VMEM).
    w_kwargs = {}
    if c_pad >= 768 and hasattr(pl, "Buffered"):
        w_kwargs = {"pipeline_mode": pl.Buffered(1)}
    mat_spec = pl.BlockSpec((c_pad, c_pad), lambda i: (0, 0), **w_kwargs)
    vec_spec = pl.BlockSpec((8, c_pad), lambda i: (0, 0), **w_kwargs)

    cost = pl.CostEstimate(
        flops=2 * 3 * n * c_pad * c_pad,             # three c x c matmuls
        transcendentals=n,                           # one rsqrt per row
        bytes_accessed=2 * n * c_pad * itemsize      # row stream in + out
        + 3 * c_pad * c_pad * 2                      # bf16 weights
        + 8 * c_pad * 4,                             # packed vectors
    )

    out = pl.pallas_call(
        functools.partial(_smt_kernel, inv_c=1.0 / c, apply_mask=dc > 0),
        out_shape=jax.ShapeDtypeStruct((n, c_pad), io_dtype),
        grid_spec=pltpu.PrefetchScalarGridSpec(
            num_scalar_prefetch=0,
            grid=(steps,),
            in_specs=[row_spec, mat_spec, mat_spec, mat_spec, vec_spec],
            out_specs=row_spec,
        ),
        compiler_params=pltpu.CompilerParams(
            dimension_semantics=("parallel",),
            vmem_limit_bytes=_vmem_limit_bytes(),
        ),
        cost_estimate=cost,
    )(s2d, params["w1p"], params["w2p"], params["w3p"], params["vec"])

    if dc:
        out = out[:, :c]
    return out.reshape(orig_shape)


def init_params(c, key):
    """Deterministic synthetic init mirroring the module's parameter shapes.

    linear_1/linear_2: 'relu' (He) init ~ normal(0, sqrt(2/fan_in)); bias 0.
    linear_3: 'final' init -> weights 0, bias 0 (tiny deterministic values so
    the third matmul path is actually exercised).  LayerNorm: gamma=1, beta=0.
    Weights stored (in_dim, out_dim): forward is s @ W + b.
    """
    k1, k2, k3 = jax.random.split(key, 3)
    std = np.sqrt(2.0 / c)
    w1 = jax.random.normal(k1, (c, c), jnp.float32) * std
    w2 = jax.random.normal(k2, (c, c), jnp.float32) * std
    w3 = jax.random.normal(k3, (c, c), jnp.float32) * 1e-2
    return {
        "w1": w1, "b1": jnp.zeros((c,), jnp.float32),
        "w2": w2, "b2": jnp.zeros((c,), jnp.float32),
        "w3": w3, "b3": jnp.zeros((c,), jnp.float32),
        "ln_gamma": jnp.ones((c,), jnp.float32),
        "ln_beta": jnp.zeros((c,), jnp.float32),
    }


def reference(s, p):
    """Pure-f32 JAX reference matching the PyTorch forward."""
    h = jnp.maximum(s @ p["w1"] + p["b1"], 0.0)
    h = jnp.maximum(h @ p["w2"] + p["b2"], 0.0)
    h = h @ p["w3"] + p["b3"]
    s = h + s
    mean = jnp.mean(s, axis=-1, keepdims=True)
    var = jnp.mean((s - mean) ** 2, axis=-1, keepdims=True)
    return (s - mean) * jax.lax.rsqrt(var + 1e-5) * p["ln_gamma"] + p["ln_beta"]


if __name__ == "__main__":
    key = jax.random.PRNGKey(0)
    k_in, k_p, k_in2, k_p2 = jax.random.split(key, 4)

    # Test 1: lane-dense channel count, prepared (pre-padded bf16) params.
    batch, seq, c = 2, 8, 128
    s = jax.random.normal(k_in, (batch, seq, c), jnp.float32)
    raw_params = init_params(c, k_p)
    prep = prepare_params(raw_params)                      # pad/cast ONCE
    out = jax.block_until_ready(structure_module_transition(s, prep))
    ref = reference(s, raw_params)
    np.testing.assert_allclose(np.asarray(out.astype(jnp.float32)),
                               np.asarray(ref), rtol=3e-2, atol=3e-2)

    # Test 2: ragged rows and channels (exercises channel padding + masked
    # LayerNorm variance + the ragged row block), raw-params path.
    batch2, seq2, c2 = 2, 5, 96
    s2 = jax.random.normal(k_in2, (batch2, seq2, c2), jnp.float32)
    params2 = init_params(c2, k_p2)
    out2 = jax.block_until_ready(structure_module_transition(s2, params2))
    ref2 = reference(s2, params2)
    np.testing.assert_allclose(np.asarray(out2.astype(jnp.float32)),
                               np.asarray(ref2), rtol=3e-2, atol=3e-2)

    print("KERNEL_OK")
</pallas_src>

<mosaic_0001>
module attributes {stable_mosaic.version = 11 : i64} {
  func.func @_smt_kernel(%arg0: i32, %arg1: memref<16x128xbf16, #tpu.memory_space<vmem>>, %arg2: memref<128x128xbf16, #tpu.memory_space<vmem>>, %arg3: memref<128x128xbf16, #tpu.memory_space<vmem>>, %arg4: memref<128x128xbf16, #tpu.memory_space<vmem>>, %arg5: memref<8x128xf32, #tpu.memory_space<vmem>>, %arg6: memref<16x128xbf16, #tpu.memory_space<vmem>>) attributes {dimension_semantics = [#tpu.dimension_semantics<parallel>], iteration_bounds = array<i64: 1>, scalar_prefetch = 0 : i64, scratch_operands = 0 : i64, tpu.core_type = #tpu.core_type<tc>, window_params = [{transform_indices = @transform_0, window_bounds = array<i64: 16, 128>}, {pipeline_mode = #tpu.pipeline_mode<synchronous>, transform_indices = @transform_1, window_bounds = array<i64: 128, 128>}, {pipeline_mode = #tpu.pipeline_mode<synchronous>, transform_indices = @transform_2, window_bounds = array<i64: 128, 128>}, {pipeline_mode = #tpu.pipeline_mode<synchronous>, transform_indices = @transform_3, window_bounds = array<i64: 128, 128>}, {pipeline_mode = #tpu.pipeline_mode<synchronous>, transform_indices = @transform_4, window_bounds = array<i64: 8, 128>}, {transform_indices = @transform_5, window_bounds = array<i64: 16, 128>}]} {
    %c0 = arith.constant 0 : index
    %c0_0 = arith.constant 0 : index
    %0 = vector.load %arg1[%c0, %c0_0] : memref<16x128xbf16, #tpu.memory_space<vmem>>, vector<16x128xbf16>
    %1 = arith.extf %0 : vector<16x128xbf16> to vector<16x128xf32>
    %c0_1 = arith.constant 0 : index
    %c0_2 = arith.constant 0 : index
    %2 = vector.load %arg5[%c0_1, %c0_2] : memref<8x128xf32, #tpu.memory_space<vmem>>, vector<8x128xf32>
    %3 = vector.extract_strided_slice %2 {offsets = [0, 0], sizes = [1, 128], strides = [1, 1]} : vector<8x128xf32> to vector<1x128xf32>
    %4 = vector.extract_strided_slice %2 {offsets = [1, 0], sizes = [1, 128], strides = [1, 1]} : vector<8x128xf32> to vector<1x128xf32>
    %5 = vector.extract_strided_slice %2 {offsets = [2, 0], sizes = [1, 128], strides = [1, 1]} : vector<8x128xf32> to vector<1x128xf32>
    %6 = vector.extract_strided_slice %2 {offsets = [3, 0], sizes = [1, 128], strides = [1, 1]} : vector<8x128xf32> to vector<1x128xf32>
    %7 = vector.extract_strided_slice %2 {offsets = [4, 0], sizes = [1, 128], strides = [1, 1]} : vector<8x128xf32> to vector<1x128xf32>
    %c0_3 = arith.constant 0 : index
    %c0_4 = arith.constant 0 : index
    %8 = vector.load %arg2[%c0_3, %c0_4] : memref<128x128xbf16, #tpu.memory_space<vmem>>, vector<128x128xbf16>
    %cst = arith.constant dense<0.000000e+00> : vector<16x128xf32>
    %9 = tpu.matmul %0, %8, %cst {dimension_numbers = #tpu.dot_dimension_numbers<[1], [0], [0], [1], [0, 0, 1, 1], [], []>} : vector<16x128xbf16>, vector<128x128xbf16>, vector<16x128xf32> -> vector<16x128xf32>
    %10 = vector.broadcast %3 : vector<1x128xf32> to vector<16x128xf32>
    %11 = arith.addf %9, %10 : vector<16x128xf32>
    %cst_5 = arith.constant 0.000000e+00 : f32
    %12 = vector.broadcast %cst_5 : f32 to vector<16x128xf32>
    %13 = arith.maximumf %11, %12 : vector<16x128xf32>
    %14 = arith.truncf %13 : vector<16x128xf32> to vector<16x128xbf16>
    %c0_6 = arith.constant 0 : index
    %c0_7 = arith.constant 0 : index
    %15 = vector.load %arg3[%c0_6, %c0_7] : memref<128x128xbf16, #tpu.memory_space<vmem>>, vector<128x128xbf16>
    %cst_8 = arith.constant dense<0.000000e+00> : vector<16x128xf32>
    %16 = tpu.matmul %14, %15, %cst_8 {dimension_numbers = #tpu.dot_dimension_numbers<[1], [0], [0], [1], [0, 0, 1, 1], [], []>} : vector<16x128xbf16>, vector<128x128xbf16>, vector<16x128xf32> -> vector<16x128xf32>
    %17 = vector.broadcast %4 : vector<1x128xf32> to vector<16x128xf32>
    %18 = arith.addf %16, %17 : vector<16x128xf32>
    %cst_9 = arith.constant 0.000000e+00 : f32
    %19 = vector.broadcast %cst_9 : f32 to vector<16x128xf32>
    %20 = arith.maximumf %18, %19 : vector<16x128xf32>
    %21 = arith.truncf %20 : vector<16x128xf32> to vector<16x128xbf16>
    %c0_10 = arith.constant 0 : index
    %c0_11 = arith.constant 0 : index
    %22 = vector.load %arg4[%c0_10, %c0_11] : memref<128x128xbf16, #tpu.memory_space<vmem>>, vector<128x128xbf16>
    %cst_12 = arith.constant dense<0.000000e+00> : vector<16x128xf32>
    %23 = tpu.matmul %21, %22, %cst_12 {dimension_numbers = #tpu.dot_dimension_numbers<[1], [0], [0], [1], [0, 0, 1, 1], [], []>} : vector<16x128xbf16>, vector<128x128xbf16>, vector<16x128xf32> -> vector<16x128xf32>
    %24 = vector.broadcast %5 : vector<1x128xf32> to vector<16x128xf32>
    %25 = arith.addf %23, %24 : vector<16x128xf32>
    %26 = arith.addf %25, %1 : vector<16x128xf32>
    %cst_13 = arith.constant dense<0.000000e+00> : vector<16xf32>
    %27 = vector.multi_reduction <add>, %26, %cst_13 [1] : vector<16x128xf32> to vector<16xf32>
    %28 = vector.shape_cast %27 : vector<16xf32> to vector<16x1xf32>
    %cst_14 = arith.constant 7.812500e-03 : f32
    %29 = vector.broadcast %cst_14 : f32 to vector<16x1xf32>
    %30 = arith.mulf %28, %29 : vector<16x1xf32>
    %31 = vector.broadcast %30 : vector<16x1xf32> to vector<16x128xf32>
    %32 = arith.subf %26, %31 : vector<16x128xf32>
    %33 = arith.mulf %32, %32 : vector<16x128xf32>
    %cst_15 = arith.constant dense<0.000000e+00> : vector<16xf32>
    %34 = vector.multi_reduction <add>, %33, %cst_15 [1] : vector<16x128xf32> to vector<16xf32>
    %35 = vector.shape_cast %34 : vector<16xf32> to vector<16x1xf32>
    %cst_16 = arith.constant 7.812500e-03 : f32
    %36 = vector.broadcast %cst_16 : f32 to vector<16x1xf32>
    %37 = arith.mulf %35, %36 : vector<16x1xf32>
    %cst_17 = arith.constant 9.99999974E-6 : f32
    %38 = vector.broadcast %cst_17 : f32 to vector<16x1xf32>
    %39 = arith.addf %37, %38 : vector<16x1xf32>
    %40 = math.rsqrt %39 : vector<16x1xf32>
    %41 = vector.broadcast %40 : vector<16x1xf32> to vector<16x128xf32>
    %42 = arith.mulf %32, %41 : vector<16x128xf32>
    %43 = vector.broadcast %6 : vector<1x128xf32> to vector<16x128xf32>
    %44 = arith.mulf %42, %43 : vector<16x128xf32>
    %45 = vector.broadcast %7 : vector<1x128xf32> to vector<16x128xf32>
    %46 = arith.addf %44, %45 : vector<16x128xf32>
    %47 = arith.truncf %46 : vector<16x128xf32> to vector<16x128xbf16>
    %c0_18 = arith.constant 0 : index
    %c0_19 = arith.constant 0 : index
    %48 = vector.load %arg6[%c0_18, %c0_19] : memref<16x128xbf16, #tpu.memory_space<vmem>>, vector<16x128xbf16>
    tpu.vector_store %arg6[%c0_18, %c0_19], %47 {strides = array<i32>} : memref<16x128xbf16, #tpu.memory_space<vmem>>, vector<16x128xbf16>,
    return
  }
  func.func @transform_0(%arg0: i32) -> (i32, i32) {
    %c0_i32 = arith.constant 0 : i32
    %c0_i32_0 = arith.constant 0 : i32
    return %arg0, %c0_i32 : i32, i32
  }
  func.func @transform_1(%arg0: i32) -> (i32, i32) {
    %c0_i32 = arith.constant 0 : i32
    %c0_i32_0 = arith.constant 0 : i32
    %c0_i32_1 = arith.constant 0 : i32
    return %c0_i32, %c0_i32_0 : i32, i32
  }
  func.func @transform_2(%arg0: i32) -> (i32, i32) {
    %c0_i32 = arith.constant 0 : i32
    %c0_i32_0 = arith.constant 0 : i32
    %c0_i32_1 = arith.constant 0 : i32
    return %c0_i32, %c0_i32_0 : i32, i32
  }
  func.func @transform_3(%arg0: i32) -> (i32, i32) {
    %c0_i32 = arith.constant 0 : i32
    %c0_i32_0 = arith.constant 0 : i32
    %c0_i32_1 = arith.constant 0 : i32
    return %c0_i32, %c0_i32_0 : i32, i32
  }
  func.func @transform_4(%arg0: i32) -> (i32, i32) {
    %c0_i32 = arith.constant 0 : i32
    %c0_i32_0 = arith.constant 0 : i32
    %c0_i32_1 = arith.constant 0 : i32
    return %c0_i32, %c0_i32_0 : i32, i32
  }
  func.func @transform_5(%arg0: i32) -> (i32, i32) {
    %c0_i32 = arith.constant 0 : i32
    %c0_i32_0 = arith.constant 0 : i32
    return %arg0, %c0_i32 : i32, i32
  }
}

</mosaic_0001>

<llo_original>
// kernel: structure_module_transition.1
$region0: #{structure_module_transition.1}
  #allocation0 [shape = 'u32[]', space=smem, size = 0x4, offset = 0x4, fixed_abs, tag = 'smem constant byte address 0x4 - core index']
  #allocation1 [shape = 'u32[144,128]{1,0:T(1,128)}', space=vmem, size = 0x12000, scoped, tag = 'internal scratch']
  %s0 = inlined_call_operand.vmem [shape: bf16[16,128], index: 0, kind: input, shape index: {}]
  %s1 = inlined_call_operand.hbm [shape: bf16[128,128], index: 1, kind: input, shape index: {}]
  %s2 = inlined_call_operand.hbm [shape: bf16[128,128], index: 2, kind: input, shape index: {}]
  %s3 = inlined_call_operand.hbm [shape: bf16[128,128], index: 3, kind: input, shape index: {}]
  %s4 = inlined_call_operand.vmem [shape: f32[8,128], index: 4, kind: input, shape index: {}]
  %s5 = inlined_call_operand.hbm [shape: bf16[16,128], index: 5, kind: output, shape index: {}]
  %s6 = sld [smem:[#allocation0]]
  $region42: #{structure_module_transition.1} parent=0
    _
  %s8 = ssub.s32 1, %s6
  %s9 = scalar_select 0, %s8, %s6
  $region1: #{structure_module_transition.1} parent=0
    #allocation2 [shape = 'u8[32768]{0}', space=vmem, size = 0x8000, scoped, tag = 'input window, operand 1, single buffered']
    #allocation3 [shape = 's32[1]{0}', space=sflag, size = 0x4, scoped, tag = 'scoped memory for structure_module_transition.1']
    #allocation4 [shape = 's32[1]{0}', space=sflag, size = 0x4, scoped, tag = 'scoped memory for structure_module_transition.1']
    #allocation5 [shape = 'u8[32768]{0}', space=vmem, size = 0x8000, scoped, tag = 'input window, operand 2, single buffered']
    #allocation6 [shape = 's32[1]{0}', space=sflag, size = 0x4, scoped, tag = 'scoped memory for structure_module_transition.1']
    #allocation7 [shape = 'u8[32768]{0}', space=vmem, size = 0x8000, scoped, tag = 'input window, operand 3, single buffered']
    #allocation8 [shape = 'u8[4096]{0}', space=vmem, size = 0x1000, scoped, tag = 'output window, operand 0, single buffered']
    %10 = vsyncpa [#allocation3], 0
    %11 = vsyncpa [#allocation6], 0
    %12 = vsyncpa [#allocation4], 0
    // Predicated region
    $region2: #{structure_module_transition.1} parent=1 // pred_check
      _
    $region3: #{structure_module_transition.1} parent=1 // pred_check_branch
      %14 = sbr.rel (0) target = $region5
    $region4: #{structure_module_transition.1} parent=1 // pred_region
      _
    $region5: #{structure_module_transition.1} parent=1 // pred_fallthru
      _
    // Predicated region
    $region6: #{structure_module_transition.1} parent=1 // pred_check
      _
    $region7: #{structure_module_transition.1} parent=1 // pred_check_branch
      %16 = sbr.rel (0) target = $region9
    $region8: #{structure_module_transition.1} parent=1 // pred_region
      %s18 = ssub.s32 1024, 1024
      %19 = vsyncadd [#allocation3], %s18
      %s20 = sshll.u32 [#allocation2], 4
      %s21 = int_to_ptr.vmem [resolvable:$true] %s20
      %26 = dma.hbm_to_vmem [thread:$0]  %s1, 1024, %s21, [#allocation3], 64, 64, 4
    $region9: #{structure_module_transition.1} parent=1 // pred_fallthru
      _
    // Predicated region
    $region10: #{structure_module_transition.1} parent=1 // pred_check
      _
    $region11: #{structure_module_transition.1} parent=1 // pred_check_branch
      %28 = sbr.rel (0) target = $region13
    $region12: #{structure_module_transition.1} parent=1 // pred_region
      %s30 = ssub.s32 1024, 1024
      %31 = vsyncadd [#allocation6], %s30
      %s32 = sshll.u32 [#allocation5], 4
      %s33 = int_to_ptr.vmem [resolvable:$true] %s32
      %38 = dma.hbm_to_vmem [thread:$0]  %s2, 1024, %s33, [#allocation6], 64, 64, 4
    $region13: #{structure_module_transition.1} parent=1 // pred_fallthru
      _
    // Predicated region
    $region14: #{structure_module_transition.1} parent=1 // pred_check
      _
    $region15: #{structure_module_transition.1} parent=1 // pred_check_branch
      %40 = sbr.rel (0) target = $region17
    $region16: #{structure_module_transition.1} parent=1 // pred_region
      %s42 = ssub.s32 1024, 1024
      %43 = vsyncadd [#allocation6], %s42
      %s44 = sshll.u32 [#allocation7], 4
      %s45 = int_to_ptr.vmem [resolvable:$true] %s44
      %50 = dma.hbm_to_vmem [thread:$0]  %s3, 1024, %s45, [#allocation6], 64, 64, 4
    $region17: #{structure_module_transition.1} parent=1 // pred_fallthru
      _
    // Predicated region
    $region18: #{structure_module_transition.1} parent=1 // pred_check
      _
    $region19: #{structure_module_transition.1} parent=1 // pred_check_branch
      %52 = sbr.rel (0) target = $region21
    $region20: #{structure_module_transition.1} parent=1 // pred_region
      _
    $region21: #{structure_module_transition.1} parent=1 // pred_fallthru
      _
    // Predicated region
    $region22: #{structure_module_transition.1} parent=1 // pred_check
      _
    $region23: #{structure_module_transition.1} parent=1 // pred_check_branch
      %54 = sbr.rel (0) target = $region25
    $region24: #{structure_module_transition.1} parent=1 // pred_region
      %55 = dma.done [#allocation3], 1024
    $region25: #{structure_module_transition.1} parent=1 // pred_fallthru
      _
    // Predicated region
    $region26: #{structure_module_transition.1} parent=1 // pred_check
      _
    $region27: #{structure_module_transition.1} parent=1 // pred_check_branch
      %57 = sbr.rel (0) target = $region29
    $region28: #{structure_module_transition.1} parent=1 // pred_region
      %58 = dma.done [#allocation6], 1024
    $region29: #{structure_module_transition.1} parent=1 // pred_fallthru
      _
    // Predicated region
    $region30: #{structure_module_transition.1} parent=1 // pred_check
      _
    $region31: #{structure_module_transition.1} parent=1 // pred_check_branch
      %60 = sbr.rel (0) target = $region33
    $region32: #{structure_module_transition.1} parent=1 // pred_region
      %61 = dma.done [#allocation6], 1024
    $region33: #{structure_module_transition.1} parent=1 // pred_fallthru
      _
    %v63 = vld [vmem:[%s0] sm:$0xf]
    %v64 = vld [vmem:[%s0 + $0x4] sm:$0xf]
    %v65 = vunpack.c.l.bf16 %v63
    %v66 = vunpack.c.l.bf16 %v64
    %v67 = vld [vmem:[%s4] sm:$0xff]
    %v68 = vld [vmem:[#allocation2] sm:$0xf]
    %v69 = vld [vmem:[#allocation2 + $0x4] sm:$0xf]
    %v70 = vld [vmem:[#allocation2 + $0x8] sm:$0xf]
    %v71 = vld [vmem:[#allocation2 + $0xc] sm:$0xf]
    %v72 = vld [vmem:[#allocation2 + $0x10] sm:$0xf]
    %v73 = vld [vmem:[#allocation2 + $0x14] sm:$0xf]
    %v74 = vld [vmem:[#allocation2 + $0x18] sm:$0xf]
    %v75 = vld [vmem:[#allocation2 + $0x1c] sm:$0xf]
    %v76 = vld [vmem:[#allocation2 + $0x20] sm:$0xf]
    %v77 = vld [vmem:[#allocation2 + $0x24] sm:$0xf]
    %v78 = vld [vmem:[#allocation2 + $0x28] sm:$0xf]
    %v79 = vld [vmem:[#allocation2 + $0x2c] sm:$0xf]
    %v80 = vld [vmem:[#allocation2 + $0x30] sm:$0xf]
    %v81 = vld [vmem:[#allocation2 + $0x34] sm:$0xf]
    %v82 = vld [vmem:[#allocation2 + $0x38] sm:$0xf]
    %v83 = vld [vmem:[#allocation2 + $0x3c] sm:$0xf]
    %v84 = vlaneseq
    %v85 = vshrl.u32 %v84, 7
    %v86 = vsub.s32 0, %v85
    %v87 = vrot.slane %v67, %v86
    %v90 = vunpack.c.l.b16 %v63
    %v91 = vunpack.c.l.b16 %v64
    %v92 = vpack.c.b16 %v91, %v90
    %v110 = vunpack.c.l.b16 %v68
    %v111 = vunpack.c.l.b16 %v69
    %v112 = vunpack.c.l.b16 %v70
    %v113 = vunpack.c.l.b16 %v71
    %v114 = vunpack.c.l.b16 %v72
    %v115 = vunpack.c.l.b16 %v73
    %v116 = vunpack.c.l.b16 %v74
    %v117 = vunpack.c.l.b16 %v75
    %v118 = vunpack.c.l.b16 %v76
    %v119 = vunpack.c.l.b16 %v77
    %v120 = vunpack.c.l.b16 %v78
    %v121 = vunpack.c.l.b16 %v79
    %v122 = vunpack.c.l.b16 %v80
    %v123 = vunpack.c.l.b16 %v81
    %v124 = vunpack.c.l.b16 %v82
    %v125 = vunpack.c.l.b16 %v83
    %v126 = vpack.c.b16 %v111, %v110
    %v127 = vpack.c.b16 %v113, %v112
    %v128 = vpack.c.b16 %v115, %v114
    %v129 = vpack.c.b16 %v117, %v116
    %v130 = vpack.c.b16 %v119, %v118
    %v131 = vpack.c.b16 %v121, %v120
    %v132 = vpack.c.b16 %v123, %v122
    %v133 = vpack.c.b16 %v125, %v124
    %142 = vmatprep.subr.bf16.mxu0 0
    %143 = vmatpush1.bf16.msra.mxu0 %v133
    %144 = vmatprep.subr.bf16.mxu0 0
    %145 = vmatpush1.bf16.msra.mxu0 %v132
    %146 = vmatprep.subr.bf16.mxu0 0
    %147 = vmatpush1.bf16.msra.mxu0 %v131
    %148 = vmatprep.subr.bf16.mxu0 0
    %149 = vmatpush1.bf16.msra.mxu0 %v130
    %150 = vmatprep.subr.bf16.mxu0 0
    %151 = vmatpush1.bf16.msra.mxu0 %v129
    %152 = vmatprep.subr.bf16.mxu0 0
    %153 = vmatpush1.bf16.msra.mxu0 %v128
    %154 = vmatprep.subr.bf16.mxu0 0
    %155 = vmatpush1.bf16.msra.mxu0 %v127
    %156 = vmatprep.subr.bf16.mxu0 0
    %157 = vmatpush1.bf16.msra.mxu0 %v126
    %158 = vmatprep.subr.bf16.mxu0 0
    %159 = vmatpush2.bf16.msra.mxu0 0
    %160 = vmatprep.subr.bf16.mxu0 0
    %161 = vmatpush2.bf16.msra.mxu0 0
    %162 = vmatprep.subr.bf16.mxu0 0
    %163 = vmatpush2.bf16.msra.mxu0 0
    %164 = vmatprep.subr.bf16.mxu0 0
    %165 = vmatpush2.bf16.msra.mxu0 0
    %166 = vmatprep.subr.bf16.mxu0 0
    %167 = vmatpush2.bf16.msra.mxu0 0
    %168 = vmatprep.subr.bf16.mxu0 0
    %169 = vmatpush2.bf16.msra.mxu0 0
    %170 = vmatprep.subr.bf16.mxu0 0
    %171 = vmatpush2.bf16.msra.mxu0 0
    %172 = vmatprep.subr.bf16.mxu0 0
    %173 = vmatpush2.bf16.msra.mxu0 0
    %174 = vmatprep.mubr.bf16.mxu0 0
    %175 = vmatmul.mubr.bf16.gmra.mxu0 %v92
    %v176 = vpop.f32.mrf.mxu0
    %v177 = vadd.f32 %v87, %v176
    %v178 = vpop.f32.mrf.mxu0
    %v179 = vpop.f32.mrf.mxu0
    %v180 = vadd.f32 %v87, %v179
    %v181 = vpop.f32.mrf.mxu0
    %182 = vdwg.mxu0
    %v183 = vmax.f32 %v177, 0.0
    %v184 = vmax.f32 %v180, 0.0
    %v185 = vpack.c.bf16 %v184, %v183
    %v186 = vld [vmem:[#allocation5] sm:$0xf]
    %v187 = vld [vmem:[#allocation5 + $0x4] sm:$0xf]
    %v188 = vld [vmem:[#allocation5 + $0x8] sm:$0xf]
    %v189 = vld [vmem:[#allocation5 + $0xc] sm:$0xf]
    %v190 = vld [vmem:[#allocation5 + $0x10] sm:$0xf]
    %v191 = vld [vmem:[#allocation5 + $0x14] sm:$0xf]
    %v192 = vld [vmem:[#allocation5 + $0x18] sm:$0xf]
    %v193 = vld [vmem:[#allocation5 + $0x1c] sm:$0xf]
    %v194 = vld [vmem:[#allocation5 + $0x20] sm:$0xf]
    %v195 = vld [vmem:[#allocation5 + $0x24] sm:$0xf]
    %v196 = vld [vmem:[#allocation5 + $0x28] sm:$0xf]
    %v197 = vld [vmem:[#allocation5 + $0x2c] sm:$0xf]
    %v198 = vld [vmem:[#allocation5 + $0x30] sm:$0xf]
    %v199 = vld [vmem:[#allocation5 + $0x34] sm:$0xf]
    %v200 = vld [vmem:[#allocation5 + $0x38] sm:$0xf]
    %v201 = vld [vmem:[#allocation5 + $0x3c] sm:$0xf]
    %v202 = vlaneseq
    %v203 = vshrl.u32 %v202, 7
    %v204 = vsub.s32 1, %v203
    %v205 = vrot.slane %v67, %v204
    %v222 = vunpack.c.l.b16 %v186
    %v223 = vunpack.c.l.b16 %v187
    %v224 = vunpack.c.l.b16 %v188
    %v225 = vunpack.c.l.b16 %v189
    %v226 = vunpack.c.l.b16 %v190
    %v227 = vunpack.c.l.b16 %v191
    %v228 = vunpack.c.l.b16 %v192
    %v229 = vunpack.c.l.b16 %v193
    %v230 = vunpack.c.l.b16 %v194
    %v231 = vunpack.c.l.b16 %v195
    %v232 = vunpack.c.l.b16 %v196
    %v233 = vunpack.c.l.b16 %v197
    %v234 = vunpack.c.l.b16 %v198
    %v235 = vunpack.c.l.b16 %v199
    %v236 = vunpack.c.l.b16 %v200
    %v237 = vunpack.c.l.b16 %v201
    %v238 = vpack.c.b16 %v223, %v222
    %v239 = vpack.c.b16 %v225, %v224
    %v240 = vpack.c.b16 %v227, %v226
    %v241 = vpack.c.b16 %v229, %v228
    %v242 = vpack.c.b16 %v231, %v230
    %v243 = vpack.c.b16 %v233, %v232
    %v244 = vpack.c.b16 %v235, %v234
    %v245 = vpack.c.b16 %v237, %v236
    %254 = vmatprep.subr.bf16.mxu0 0
    %255 = vmatpush1.bf16.msra.mxu0 %v245
    %256 = vmatprep.subr.bf16.mxu0 0
    %257 = vmatpush1.bf16.msra.mxu0 %v244
    %258 = vmatprep.subr.bf16.mxu0 0
    %259 = vmatpush1.bf16.msra.mxu0 %v243
    %260 = vmatprep.subr.bf16.mxu0 0
    %261 = vmatpush1.bf16.msra.mxu0 %v242
    %262 = vmatprep.subr.bf16.mxu0 0
    %263 = vmatpush1.bf16.msra.mxu0 %v241
    %264 = vmatprep.subr.bf16.mxu0 0
    %265 = vmatpush1.bf16.msra.mxu0 %v240
    %266 = vmatprep.subr.bf16.mxu0 0
    %267 = vmatpush1.bf16.msra.mxu0 %v239
    %268 = vmatprep.subr.bf16.mxu0 0
    %269 = vmatpush1.bf16.msra.mxu0 %v238
    %270 = vmatprep.subr.bf16.mxu0 0
    %271 = vmatpush2.bf16.msra.mxu0 0
    %272 = vmatprep.subr.bf16.mxu0 0
    %273 = vmatpush2.bf16.msra.mxu0 0
    %274 = vmatprep.subr.bf16.mxu0 0
    %275 = vmatpush2.bf16.msra.mxu0 0
    %276 = vmatprep.subr.bf16.mxu0 0
    %277 = vmatpush2.bf16.msra.mxu0 0
    %278 = vmatprep.subr.bf16.mxu0 0
    %279 = vmatpush2.bf16.msra.mxu0 0
    %280 = vmatprep.subr.bf16.mxu0 0
    %281 = vmatpush2.bf16.msra.mxu0 0
    %282 = vmatprep.subr.bf16.mxu0 0
    %283 = vmatpush2.bf16.msra.mxu0 0
    %284 = vmatprep.subr.bf16.mxu0 0
    %285 = vmatpush2.bf16.msra.mxu0 0
    %286 = vmatprep.mubr.bf16.mxu0 0
    %287 = vmatmul.mubr.bf16.gmra.mxu0 %v185
    %v288 = vpop.f32.mrf.mxu0
    %v289 = vadd.f32 %v205, %v288
    %v290 = vpop.f32.mrf.mxu0
    %v291 = vpop.f32.mrf.mxu0
    %v292 = vadd.f32 %v205, %v291
    %v293 = vpop.f32.mrf.mxu0
    %294 = vdwg.mxu0
    %v295 = vmax.f32 %v289, 0.0
    %v296 = vmax.f32 %v292, 0.0
    %v297 = vpack.c.bf16 %v296, %v295
    %v298 = vld [vmem:[#allocation7] sm:$0xf]
    %v299 = vld [vmem:[#allocation7 + $0x4] sm:$0xf]
    %v300 = vld [vmem:[#allocation7 + $0x8] sm:$0xf]
    %v301 = vld [vmem:[#allocation7 + $0xc] sm:$0xf]
    %v302 = vld [vmem:[#allocation7 + $0x10] sm:$0xf]
    %v303 = vld [vmem:[#allocation7 + $0x14] sm:$0xf]
    %v304 = vld [vmem:[#allocation7 + $0x18] sm:$0xf]
    %v305 = vld [vmem:[#allocation7 + $0x1c] sm:$0xf]
    %v306 = vld [vmem:[#allocation7 + $0x20] sm:$0xf]
    %v307 = vld [vmem:[#allocation7 + $0x24] sm:$0xf]
    %v308 = vld [vmem:[#allocation7 + $0x28] sm:$0xf]
    %v309 = vld [vmem:[#allocation7 + $0x2c] sm:$0xf]
    %v310 = vld [vmem:[#allocation7 + $0x30] sm:$0xf]
    %v311 = vld [vmem:[#allocation7 + $0x34] sm:$0xf]
    %v312 = vld [vmem:[#allocation7 + $0x38] sm:$0xf]
    %v313 = vld [vmem:[#allocation7 + $0x3c] sm:$0xf]
    %v314 = vlaneseq
    %v315 = vshrl.u32 %v314, 7
    %v316 = vsub.s32 2, %v315
    %v317 = vrot.slane %v67, %v316
    %v334 = vunpack.c.l.b16 %v298
    %v335 = vunpack.c.l.b16 %v299
    %v336 = vunpack.c.l.b16 %v300
    %v337 = vunpack.c.l.b16 %v301
    %v338 = vunpack.c.l.b16 %v302
    %v339 = vunpack.c.l.b16 %v303
    %v340 = vunpack.c.l.b16 %v304
    %v341 = vunpack.c.l.b16 %v305
    %v342 = vunpack.c.l.b16 %v306
    %v343 = vunpack.c.l.b16 %v307
    %v344 = vunpack.c.l.b16 %v308
    %v345 = vunpack.c.l.b16 %v309
    %v346 = vunpack.c.l.b16 %v310
    %v347 = vunpack.c.l.b16 %v311
    %v348 = vunpack.c.l.b16 %v312
    %v349 = vunpack.c.l.b16 %v313
    %v350 = vpack.c.b16 %v335, %v334
    %v351 = vpack.c.b16 %v337, %v336
    %v352 = vpack.c.b16 %v339, %v338
    %v353 = vpack.c.b16 %v341, %v340
    %v354 = vpack.c.b16 %v343, %v342
    %v355 = vpack.c.b16 %v345, %v344
    %v356 = vpack.c.b16 %v347, %v346
    %v357 = vpack.c.b16 %v349, %v348
    %366 = vmatprep.subr.bf16.mxu0 0
    %367 = vmatpush1.bf16.msra.mxu0 %v357
    %368 = vmatprep.subr.bf16.mxu0 0
    %369 = vmatpush1.bf16.msra.mxu0 %v356
    %370 = vmatprep.subr.bf16.mxu0 0
    %371 = vmatpush1.bf16.msra.mxu0 %v355
    %372 = vmatprep.subr.bf16.mxu0 0
    %373 = vmatpush1.bf16.msra.mxu0 %v354
    %374 = vmatprep.subr.bf16.mxu0 0
    %375 = vmatpush1.bf16.msra.mxu0 %v353
    %376 = vmatprep.subr.bf16.mxu0 0
    %377 = vmatpush1.bf16.msra.mxu0 %v352
    %378 = vmatprep.subr.bf16.mxu0 0
    %379 = vmatpush1.bf16.msra.mxu0 %v351
    %380 = vmatprep.subr.bf16.mxu0 0
    %381 = vmatpush1.bf16.msra.mxu0 %v350
    %382 = vmatprep.subr.bf16.mxu0 0
    %383 = vmatpush2.bf16.msra.mxu0 0
    %384 = vmatprep.subr.bf16.mxu0 0
    %385 = vmatpush2.bf16.msra.mxu0 0
    %386 = vmatprep.subr.bf16.mxu0 0
    %387 = vmatpush2.bf16.msra.mxu0 0
    %388 = vmatprep.subr.bf16.mxu0 0
    %389 = vmatpush2.bf16.msra.mxu0 0
    %390 = vmatprep.subr.bf16.mxu0 0
    %391 = vmatpush2.bf16.msra.mxu0 0
    %392 = vmatprep.subr.bf16.mxu0 0
    %393 = vmatpush2.bf16.msra.mxu0 0
    %394 = vmatprep.subr.bf16.mxu0 0
    %395 = vmatpush2.bf16.msra.mxu0 0
    %396 = vmatprep.subr.bf16.mxu0 0
    %397 = vmatpush2.bf16.msra.mxu0 0
    %398 = vmatprep.mubr.bf16.mxu0 0
    %399 = vmatmul.mubr.bf16.gmra.mxu0 %v297
    %v400 = vpop.f32.mrf.mxu0
    %v401 = vadd.f32 %v317, %v400
    %v402 = vpop.f32.mrf.mxu0
    %v403 = vpop.f32.mrf.mxu0
    %v404 = vadd.f32 %v317, %v403
    %v405 = vpop.f32.mrf.mxu0
    %406 = vdwg.mxu0
    %v407 = vadd.f32 %v401, %v65
    %v408 = vadd.f32 %v404, %v66
    %409 = vadd.xlane.f32.xlu0 %v407
    %v410 = vpop.xlane.xlu0 %409
    %411 = vadd.xlane.f32.xlu0 %v408
    %v412 = vpop.xlane.xlu0 %411
    %v413 = vmul.f32 %v410, 0.0078125
    %v414 = vmul.f32 %v412, 0.0078125
    %v415 = vsub.f32 %v407, %v413
    %v416 = vsub.f32 %v408, %v414
    %v417 = vmul.f32 %v415, %v415
    %v418 = vmul.f32 %v416, %v416
    %419 = vadd.xlane.f32.xlu0 %v417
    %v420 = vpop.xlane.xlu0 %419
    %421 = vadd.xlane.f32.xlu0 %v418
    %v422 = vpop.xlane.xlu0 %421
    %v423 = vmul.f32 %v420, 0.0078125
    %v424 = vmul.f32 %v422, 0.0078125
    %v425 = vadd.f32 %v423, 1e-05
    %v426 = vadd.f32 %v424, 1e-05
    %v427 = vrsqrt.pop %v425
    %v428 = vrsqrt.pop %v426
    %v429 = vmul.f32 %v415, %v427
    %v430 = vmul.f32 %v416, %v428
    %v431 = vlaneseq
    %v432 = vshrl.u32 %v431, 7
    %v433 = vsub.s32 3, %v432
    %v434 = vrot.slane %v67, %v433
    %v435 = vmul.f32 %v429, %v434
    %v436 = vmul.f32 %v430, %v434
    %v437 = vlaneseq
    %v438 = vshrl.u32 %v437, 7
    %v439 = vsub.s32 4, %v438
    %v440 = vrot.slane %v67, %v439
    %v441 = vadd.f32 %v435, %v440
    %v442 = vadd.f32 %v436, %v440
    %v443 = vpack.c.bf16 %v442, %v441
    %v445 = vunpack.c.l.b16 %v443
    %v446 = vunpack.c.h.b16 %v443
    %v447 = vpack.c.b16 %v445, %v445
    %v448 = vpack.c.b16 %v446, %v446
    %451 = vst [vmem:[#allocation8] sm:$0xf] %v447
    %452 = vst [vmem:[#allocation8 + $0x4] sm:$0xf] %v448
    // Predicated region
    $region34: #{structure_module_transition.1} parent=1 // pred_check
      _
    $region35: #{structure_module_transition.1} parent=1 // pred_check_branch
      %454 = sbr.rel (0) target = $region37
    $region36: #{structure_module_transition.1} parent=1 // pred_region
      %s456 = ssub.s32 128, 128
      %457 = vsyncadd [#allocation4], %s456
      %s458 = sshll.u32 [#allocation8], 4
      %s459 = int_to_ptr.vmem [resolvable:$true] %s458
      %464 = dma.vmem_to_hbm [thread:$0]  %s459, 128, %s5, [#allocation4], 64, 64, 4
    $region37: #{structure_module_transition.1} parent=1 // pred_fallthru
      _
    // Predicated region
    $region38: #{structure_module_transition.1} parent=1 // pred_check
      _
    $region39: #{structure_module_transition.1} parent=1 // pred_check_branch
      %466 = sbr.rel (0) target = $region41
    $region40: #{structure_module_transition.1} parent=1 // pred_region
      %467 = dma.done [#allocation4], 128
    $region41: #{structure_module_transition.1} parent=1 // pred_fallthru
      _
    %468 = vsyncpa [#allocation3], 1
    %469 = vsyncpa [#allocation6], 1
    %470 = vsyncpa [#allocation4], 1

</llo_original>
